<compile_context>
chip_gen: v5e
topology: v5e:2x2
jax: 0.10.0
libtpu: 0.0.40
codegen_flags: <defaults>
</compile_context>

<pallas_src>
import numpy as np
import jax
import jax.numpy as jnp
from jax import lax
from jax.experimental import pallas as pl
from jax.experimental.pallas import tpu as pltpu


# ----------------------------- Pallas kernel ---------------------------------
def _aeqc_kernel(x_ref, w_ref, b_ref, out_ref):
    # w_ref: (F_in, 2D) = [Re(W_ce_pad @ U^T) | Im(W_ce_pad @ U^T)]
    # b_ref: (1, 2D)    = [Re(b_ce_pad @ U^T) | Im(b_ce_pad @ U^T)]
    D2 = w_ref.shape[1]
    D = D2 // 2

    # Single MXU op: unnormalized final-state amplitudes (real | imag packed in lanes).
    z = jnp.dot(x_ref[...], w_ref[...], preferred_element_type=jnp.float32) + b_ref[...]
    zsq = z * z                                               # (bm, 2D)

    # <Z_0>: +1 for basis states with MSB=0 (idx < D/2), -1 otherwise.  The sign
    # pattern repeats identically over the real and imag halves of the packed lanes.
    idx = lax.broadcasted_iota(jnp.int32, zsq.shape, 1)
    zsign = jnp.where((idx % D) < (D // 2), 1.0, -1.0).astype(jnp.float32)

    total = jnp.sum(zsq, axis=1, keepdims=True)               # (bm, 1)  == ||y||^2
    signed = jnp.sum(zsq * zsign, axis=1, keepdims=True)      # (bm, 1)
    # TODO(synk): like the original module, this divides by ||CE(x)||^2 and will
    # produce NaN/inf for an exactly-zero encoder output (no epsilon added).
    z0 = signed / total                                       # (bm, 1)

    # Lane-dense write: column 0 -> 0.5*(1+z0), column 1 -> 0.5*(1-z0), rest ignored.
    lane = lax.broadcasted_iota(jnp.int32, out_ref.shape, 1)
    flip = jnp.where(lane == 1, -1.0, 1.0).astype(jnp.float32)
    out_ref[...] = 0.5 * (1.0 + z0 * flip)


def _round_up(n, m):
    return ((n + m - 1) // m) * m


def aeqc_crx_forward(x_flat, w_fold, b_fold, *, block_b=128):
    """x_flat: (B, F_in) f32. Returns (B, 2) f32: [0.5*(1+<Z0>), 0.5*(1-<Z0>)] per row."""
    B, F_in = x_flat.shape
    D2 = w_fold.shape[1]
    OUT_W = 128                                   # lane-dense output width

    bm = min(block_b, _round_up(B, 8))            # batch tile (rows of the MXU matmul)
    B_pad = _round_up(B, bm)
    if B_pad != B:
        x_flat = jnp.concatenate(
            [x_flat, jnp.zeros((B_pad - B, F_in), x_flat.dtype)], axis=0)

    out = pl.pallas_call(
        _aeqc_kernel,
        out_shape=jax.ShapeDtypeStruct((B_pad, OUT_W), jnp.float32),
        grid=(B_pad // bm,),
        in_specs=[
            pl.BlockSpec((bm, F_in), lambda i: (i, 0)),
            pl.BlockSpec((F_in, D2), lambda i: (0, 0)),
            pl.BlockSpec((1, D2), lambda i: (0, 0)),
        ],
        out_specs=pl.BlockSpec((bm, OUT_W), lambda i: (i, 0)),
        compiler_params=pltpu.CompilerParams(dimension_semantics=("parallel",)),
    )(x_flat, w_fold, b_fold)
    return out[:B, :2]


# ------------------------- gate construction (host, static) -------------------
def _kron_all(ops):
    out = ops[0]
    for o in ops[1:]:
        out = np.kron(out, o)
    return out


def _rot_gate(phi, theta, omega):
    c, s = np.cos(theta / 2.0), np.sin(theta / 2.0)
    return np.array(
        [[np.exp(-0.5j * (phi + omega)) * c, -np.exp(0.5j * (phi - omega)) * s],
         [np.exp(-0.5j * (phi - omega)) * s,  np.exp(0.5j * (phi + omega)) * c]],
        dtype=np.complex128)


def _embed_1q(gate, wire, n_wires):
    ops = [np.eye(2, dtype=np.complex128)] * n_wires
    ops[wire] = gate
    return _kron_all(ops)


def _crx_full(theta, control, target, n_wires):
    I2 = np.eye(2, dtype=np.complex128)
    E0 = np.diag([1.0, 0.0]).astype(np.complex128)
    E1 = np.diag([0.0, 1.0]).astype(np.complex128)
    X = np.array([[0, 1], [1, 0]], dtype=np.complex128)

    def embed(d):
        ops = [I2] * n_wires
        for w, o in d.items():
            ops[w] = o
        return _kron_all(ops)

    return (embed({control: E0})
            + np.cos(theta / 2.0) * embed({control: E1})
            - 1j * np.sin(theta / 2.0) * embed({control: E1, target: X}))


def build_gate_list(qc_optvar, qc_crx_optvar, n_wires):
    # TODO(synk): stronglayerCRX source is not provided; assumed StronglyEntanglingLayer
    # structure: per-layer Rot(phi,theta,omega) on every wire, then a ring of CRX gates
    # with range r=1 (control w -> target (w+1) % n_wires).
    n_layers = qc_optvar.shape[0]
    gates = []
    for l in range(n_layers):
        for w in range(n_wires):
            gates.append(_embed_1q(
                _rot_gate(qc_optvar[l, 0, w], qc_optvar[l, 1, w], qc_optvar[l, 2, w]),
                w, n_wires))
        for w in range(n_wires):
            gates.append(_crx_full(qc_crx_optvar[l, w], w, (w + 1) % n_wires, n_wires))
    return gates                                   # applied left-to-right as U @ psi


def fold_static_circuit(w_ce_pad, b_ce_pad, gates):
    """Compose all static gates into one unitary and fold it into the encoder."""
    D = gates[0].shape[0]
    U = np.eye(D, dtype=np.complex128)
    for g in gates:
        U = g @ U                                  # U_total = G_last @ ... @ G_0
    UT = U.T                                       # row-vector form: y_row @ U^T == U @ y
    wf = np.asarray(w_ce_pad, dtype=np.float64) @ UT          # (F_in, D) complex
    bf = np.asarray(b_ce_pad, dtype=np.float64) @ UT          # (1, D) complex
    w_fold = np.concatenate([wf.real, wf.imag], axis=1).astype(np.float32)  # (F_in, 2D)
    b_fold = np.concatenate([bf.real, bf.imag], axis=1).astype(np.float32)  # (1, 2D)
    return jnp.asarray(w_fold), jnp.asarray(b_fold)


# ----------------------------------- main --------------------------------------
if __name__ == "__main__":
    n_wires = 4
    n_qfeatures = 12
    n_QClayers = 2
    D = 2 ** n_wires
    to_pad = D - n_qfeatures

    B, C, H, W = 8, 4, 8, 8
    F_in = C * H * W

    key = jax.random.PRNGKey(0)
    kx, kw, kb, kq, kc = jax.random.split(key, 5)
    x = jax.random.normal(kx, (B, C, H, W), dtype=jnp.float32)

    # TODO(synk): CE is a constructor-injected classical encoder in the original module;
    # a deterministic Linear(F_in -> n_qfeatures) stand-in is used here.
    w_ce = jax.random.normal(kw, (F_in, n_qfeatures), dtype=jnp.float32) / np.sqrt(F_in)
    b_ce = jax.random.normal(kb, (n_qfeatures,), dtype=jnp.float32) * 0.1

    # parameters mirroring torch.randn((n_QClayers, 3, n_wires)) / ((n_QClayers, n_wires))
    qc_optvar = np.asarray(jax.random.normal(kq, (n_QClayers, 3, n_wires), dtype=jnp.float32),
                           dtype=np.float64)
    qc_crx_optvar = np.asarray(jax.random.normal(kc, (n_QClayers, n_wires), dtype=jnp.float32),
                               dtype=np.float64)

    # zero-pad encoder weights so the encoder output directly matches F.pad(CE(x), (0, to_pad))
    w_ce_pad = np.concatenate([np.asarray(w_ce), np.zeros((F_in, to_pad), np.float32)], axis=1)
    b_ce_pad = np.concatenate([np.asarray(b_ce), np.zeros((to_pad,), np.float32)]).reshape(1, D)

    gates = build_gate_list(qc_optvar, qc_crx_optvar, n_wires)
    w_fold, b_fold = fold_static_circuit(w_ce_pad, b_ce_pad, gates)

    x_flat = x.reshape(B, F_in)
    out = aeqc_crx_forward(x_flat, w_fold, b_fold)
    out = jax.block_until_ready(out)

    # ---- pure-numpy reference check (gates applied one-by-one, no folding) ----
    y = np.asarray(x_flat, np.float64) @ np.asarray(w_ce_pad, np.float64) + b_ce_pad
    sign = np.where(np.arange(D) < D // 2, 1.0, -1.0)
    ref = np.zeros((B, 2), dtype=np.float32)
    for b in range(B):
        psi = (y[b] / np.linalg.norm(y[b])).astype(np.complex128)
        for g in gates:
            psi = g @ psi
        z0 = float(np.sum(np.abs(psi) ** 2 * sign))
        ref[b] = [0.5 * (1 + z0), 0.5 * (1 - z0)]
    assert np.allclose(np.asarray(out), ref, atol=1e-4), (np.asarray(out), ref)

    print("KERNEL_OK")
</pallas_src>

<mosaic_0001>
module attributes {stable_mosaic.version = 11 : i64} {
  func.func @_aeqc_kernel(%arg0: i32, %arg1: memref<8x256xf32, #tpu.memory_space<vmem>>, %arg2: memref<256x32xf32, #tpu.memory_space<vmem>>, %arg3: memref<1x32xf32, #tpu.memory_space<vmem>>, %arg4: memref<8x128xf32, #tpu.memory_space<vmem>>) attributes {dimension_semantics = [#tpu.dimension_semantics<parallel>], iteration_bounds = array<i64: 1>, scalar_prefetch = 0 : i64, scratch_operands = 0 : i64, tpu.core_type = #tpu.core_type<tc>, window_params = [{transform_indices = @transform_0, window_bounds = array<i64: 8, 256>}, {pipeline_mode = #tpu.pipeline_mode<synchronous>, transform_indices = @transform_1, window_bounds = array<i64: 256, 32>}, {pipeline_mode = #tpu.pipeline_mode<synchronous>, transform_indices = @transform_2, window_bounds = array<i64: 1, 32>}, {transform_indices = @transform_3, window_bounds = array<i64: 8, 128>}]} {
    %c0 = arith.constant 0 : index
    %c0_0 = arith.constant 0 : index
    %0 = vector.load %arg1[%c0, %c0_0] : memref<8x256xf32, #tpu.memory_space<vmem>>, vector<8x256xf32>
    %c0_1 = arith.constant 0 : index
    %c0_2 = arith.constant 0 : index
    %1 = vector.load %arg2[%c0_1, %c0_2] : memref<256x32xf32, #tpu.memory_space<vmem>>, vector<256x32xf32>
    %cst = arith.constant dense<0.000000e+00> : vector<8x32xf32>
    %2 = tpu.matmul %0, %1, %cst {dimension_numbers = #tpu.dot_dimension_numbers<[1], [0], [0], [1], [0, 0, 1, 1], [], []>} : vector<8x256xf32>, vector<256x32xf32>, vector<8x32xf32> -> vector<8x32xf32>
    %c0_3 = arith.constant 0 : index
    %c0_4 = arith.constant 0 : index
    %3 = vector.load %arg3[%c0_3, %c0_4] : memref<1x32xf32, #tpu.memory_space<vmem>>, vector<1x32xf32>
    %4 = vector.broadcast %3 : vector<1x32xf32> to vector<8x32xf32>
    %5 = arith.addf %2, %4 : vector<8x32xf32>
    %6 = arith.mulf %5, %5 : vector<8x32xf32>
    %7 = tpu.iota {dimensions = array<i32: 1>} : vector<8x32xi32>
    %c16_i32 = arith.constant 16 : i32
    %c0_i32 = arith.constant 0 : i32
    %8 = arith.cmpi eq, %c16_i32, %c0_i32 : i32
    %c1_i32 = arith.constant 1 : i32
    %9 = arith.select %8, %c1_i32, %c16_i32 : i32
    %10 = vector.broadcast %9 : i32 to vector<8x32xi32>
    %11 = arith.remsi %7, %10 : vector<8x32xi32>
    %c0_i32_5 = arith.constant 0 : i32
    %12 = vector.broadcast %c0_i32_5 : i32 to vector<8x32xi32>
    %13 = arith.cmpi ne, %11, %12 : vector<8x32xi32>
    %c0_i32_6 = arith.constant 0 : i32
    %14 = vector.broadcast %c0_i32_6 : i32 to vector<8x32xi32>
    %15 = arith.cmpi slt, %11, %14 : vector<8x32xi32>
    %c0_i32_7 = arith.constant 0 : i32
    %16 = arith.cmpi slt, %9, %c0_i32_7 : i32
    %17 = vector.broadcast %16 : i1 to vector<8x32xi1>
    %18 = vector.broadcast %17 : vector<8x32xi1> to vector<8x32xi1>
    %19 = arith.xori %15, %18 : vector<8x32xi1>
    %20 = arith.andi %19, %13 : vector<8x32xi1>
    %21 = vector.broadcast %9 : i32 to vector<8x32xi32>
    %22 = arith.addi %11, %21 : vector<8x32xi32>
    %23 = arith.select %20, %22, %11 : vector<8x32xi1>, vector<8x32xi32>
    %c8_i32 = arith.constant 8 : i32
    %24 = vector.broadcast %c8_i32 : i32 to vector<8x32xi32>
    %25 = arith.cmpi slt, %23, %24 : vector<8x32xi32>
    %cst_8 = arith.constant 1.000000e+00 : f32
    %cst_9 = arith.constant -1.000000e+00 : f32
    %26 = vector.broadcast %cst_8 : f32 to vector<8x32xf32>
    %27 = vector.broadcast %cst_9 : f32 to vector<8x32xf32>
    %28 = arith.select %25, %26, %27 : vector<8x32xi1>, vector<8x32xf32>
    %cst_10 = arith.constant dense<0.000000e+00> : vector<8xf32>
    %29 = vector.multi_reduction <add>, %6, %cst_10 [1] : vector<8x32xf32> to vector<8xf32>
    %30 = vector.shape_cast %29 : vector<8xf32> to vector<8x1xf32>
    %31 = arith.mulf %6, %28 : vector<8x32xf32>
    %cst_11 = arith.constant dense<0.000000e+00> : vector<8xf32>
    %32 = vector.multi_reduction <add>, %31, %cst_11 [1] : vector<8x32xf32> to vector<8xf32>
    %33 = vector.shape_cast %32 : vector<8xf32> to vector<8x1xf32>
    %34 = arith.divf %33, %30 : vector<8x1xf32>
    %35 = tpu.iota {dimensions = array<i32: 1>} : vector<8x128xi32>
    %c1_i32_12 = arith.constant 1 : i32
    %36 = vector.broadcast %c1_i32_12 : i32 to vector<8x128xi32>
    %37 = arith.cmpi eq, %35, %36 : vector<8x128xi32>
    %cst_13 = arith.constant -1.000000e+00 : f32
    %cst_14 = arith.constant 1.000000e+00 : f32
    %38 = vector.broadcast %cst_13 : f32 to vector<8x128xf32>
    %39 = vector.broadcast %cst_14 : f32 to vector<8x128xf32>
    %40 = arith.select %37, %38, %39 : vector<8x128xi1>, vector<8x128xf32>
    %41 = vector.broadcast %34 : vector<8x1xf32> to vector<8x128xf32>
    %42 = arith.mulf %41, %40 : vector<8x128xf32>
    %cst_15 = arith.constant 1.000000e+00 : f32
    %43 = vector.broadcast %cst_15 : f32 to vector<8x128xf32>
    %44 = arith.addf %43, %42 : vector<8x128xf32>
    %cst_16 = arith.constant 5.000000e-01 : f32
    %45 = vector.broadcast %cst_16 : f32 to vector<8x128xf32>
    %46 = arith.mulf %45, %44 : vector<8x128xf32>
    %c0_17 = arith.constant 0 : index
    %c0_18 = arith.constant 0 : index
    %47 = vector.load %arg4[%c0_17, %c0_18] : memref<8x128xf32, #tpu.memory_space<vmem>>, vector<8x128xf32>
    tpu.vector_store %arg4[%c0_17, %c0_18], %46 {strides = array<i32>} : memref<8x128xf32, #tpu.memory_space<vmem>>, vector<8x128xf32>,
    return
  }
  func.func @transform_0(%arg0: i32) -> (i32, i32) {
    %c0_i32 = arith.constant 0 : i32
    %c0_i32_0 = arith.constant 0 : i32
    return %arg0, %c0_i32 : i32, i32
  }
  func.func @transform_1(%arg0: i32) -> (i32, i32) {
    %c0_i32 = arith.constant 0 : i32
    %c0_i32_0 = arith.constant 0 : i32
    %c0_i32_1 = arith.constant 0 : i32
    return %c0_i32, %c0_i32_0 : i32, i32
  }
  func.func @transform_2(%arg0: i32) -> (i32, i32) {
    %c0_i32 = arith.constant 0 : i32
    %c0_i32_0 = arith.constant 0 : i32
    %c0_i32_1 = arith.constant 0 : i32
    return %c0_i32, %c0_i32_0 : i32, i32
  }
  func.func @transform_3(%arg0: i32) -> (i32, i32) {
    %c0_i32 = arith.constant 0 : i32
    %c0_i32_0 = arith.constant 0 : i32
    return %arg0, %c0_i32 : i32, i32
  }
}

</mosaic_0001>

<llo_original>
// kernel: tpu_custom_call.1
$region0: #{tpu_custom_call.1}
  #allocation0 [shape = 'u32[]', space=smem, size = 0x4, offset = 0x4, fixed_abs, tag = 'smem constant byte address 0x4 - core index']
  #allocation1 [shape = 'u32[72,128]{1,0:T(1,128)}', space=vmem, size = 0x9000, scoped, tag = 'internal scratch']
  %s0 = inlined_call_operand.vmem [shape: f32[8,256], index: 0, kind: input, shape index: {}]
  %s1 = inlined_call_operand.vmem [shape: f32[256,32], index: 1, kind: input, shape index: {}]
  %s2 = inlined_call_operand.vmem [shape: f32[1,32], index: 2, kind: input, shape index: {}]
  %s3 = inlined_call_operand.hbm [shape: f32[8,128], index: 3, kind: output, shape index: {}]
  %s4 = sld [smem:[#allocation0]]
  $region22: #{tpu_custom_call.1} parent=0
    _
  %s6 = ssub.s32 1, %s4
  %s7 = scalar_select 0, %s6, %s4
  $region1: #{tpu_custom_call.1} parent=0
    #allocation2 [shape = 'u8[4096]{0}', space=vmem, size = 0x1000, scoped, tag = 'output window, operand 0, single buffered']
    #allocation3 [shape = 's32[1]{0}', space=sflag, size = 0x4, scoped, tag = 'scoped memory for tpu_custom_call.1']
    %8 = vsyncpa [#allocation3], 0
    // Predicated region
    $region2: #{tpu_custom_call.1} parent=1 // pred_check
      _
    $region3: #{tpu_custom_call.1} parent=1 // pred_check_branch
      %10 = sbr.rel (0) target = $region5
    $region4: #{tpu_custom_call.1} parent=1 // pred_region
      _
    $region5: #{tpu_custom_call.1} parent=1 // pred_fallthru
      _
    // Predicated region
    $region6: #{tpu_custom_call.1} parent=1 // pred_check
      _
    $region7: #{tpu_custom_call.1} parent=1 // pred_check_branch
      %12 = sbr.rel (0) target = $region9
    $region8: #{tpu_custom_call.1} parent=1 // pred_region
      _
    $region9: #{tpu_custom_call.1} parent=1 // pred_fallthru
      _
    // Predicated region
    $region10: #{tpu_custom_call.1} parent=1 // pred_check
      _
    $region11: #{tpu_custom_call.1} parent=1 // pred_check_branch
      %14 = sbr.rel (0) target = $region13
    $region12: #{tpu_custom_call.1} parent=1 // pred_region
      _
    $region13: #{tpu_custom_call.1} parent=1 // pred_fallthru
      _
    %v15 = vld [vmem:[%s0] sm:$0xff]
    %v16 = vld [vmem:[%s0 + $0x8] sm:$0xff]
    %v17 = vld [vmem:[%s1] sm:$0xff]
    %v18 = vld [vmem:[%s1 + $0x8] sm:$0xff]
    %v19 = vld [vmem:[%s1 + $0x10] sm:$0xff]
    %v20 = vld [vmem:[%s1 + $0x18] sm:$0xff]
    %v21 = vld [vmem:[%s1 + $0x20] sm:$0xff]
    %v22 = vld [vmem:[%s1 + $0x28] sm:$0xff]
    %v23 = vld [vmem:[%s1 + $0x30] sm:$0xff]
    %v24 = vld [vmem:[%s1 + $0x38] sm:$0xff]
    %v25 = vld [vmem:[%s1 + $0x40] sm:$0xff]
    %v26 = vld [vmem:[%s1 + $0x48] sm:$0xff]
    %v27 = vld [vmem:[%s1 + $0x50] sm:$0xff]
    %v28 = vld [vmem:[%s1 + $0x58] sm:$0xff]
    %v29 = vld [vmem:[%s1 + $0x60] sm:$0xff]
    %v30 = vld [vmem:[%s1 + $0x68] sm:$0xff]
    %v31 = vld [vmem:[%s1 + $0x70] sm:$0xff]
    %v32 = vld [vmem:[%s1 + $0x78] sm:$0xff]
    %v33 = vld [vmem:[%s1 + $0x80] sm:$0xff]
    %v34 = vld [vmem:[%s1 + $0x88] sm:$0xff]
    %v35 = vld [vmem:[%s1 + $0x90] sm:$0xff]
    %v36 = vld [vmem:[%s1 + $0x98] sm:$0xff]
    %v37 = vld [vmem:[%s1 + $0xa0] sm:$0xff]
    %v38 = vld [vmem:[%s1 + $0xa8] sm:$0xff]
    %v39 = vld [vmem:[%s1 + $0xb0] sm:$0xff]
    %v40 = vld [vmem:[%s1 + $0xb8] sm:$0xff]
    %v41 = vld [vmem:[%s1 + $0xc0] sm:$0xff]
    %v42 = vld [vmem:[%s1 + $0xc8] sm:$0xff]
    %v43 = vld [vmem:[%s1 + $0xd0] sm:$0xff]
    %v44 = vld [vmem:[%s1 + $0xd8] sm:$0xff]
    %v45 = vld [vmem:[%s1 + $0xe0] sm:$0xff]
    %v46 = vld [vmem:[%s1 + $0xe8] sm:$0xff]
    %v47 = vld [vmem:[%s1 + $0xf0] sm:$0xff]
    %v48 = vld [vmem:[%s1 + $0xf8] sm:$0xff]
    %v49 = vld [vmem:[%s2] sm:$0x1]
    %v51 = vperm.slane %v49, 0
    %53 = vmatpush.msra.mxu0 %v32
    %54 = vmatpush.msra.mxu0 %v31
    %55 = vmatpush.msra.mxu0 %v30
    %56 = vmatpush.msra.mxu0 %v29
    %57 = vmatpush.msra.mxu0 %v28
    %58 = vmatpush.msra.mxu0 %v27
    %59 = vmatpush.msra.mxu0 %v26
    %60 = vmatpush.msra.mxu0 %v25
    %61 = vmatpush.msra.mxu0 %v24
    %62 = vmatpush.msra.mxu0 %v23
    %63 = vmatpush.msra.mxu0 %v22
    %64 = vmatpush.msra.mxu0 %v21
    %65 = vmatpush.msra.mxu0 %v20
    %66 = vmatpush.msra.mxu0 %v19
    %67 = vmatpush.msra.mxu0 %v18
    %68 = vmatpush.msra.mxu0 %v17
    %69 = vmatmul.f32.gmra.mxu0 %v15
    %v70 = vpop.f32.mrf.mxu0
    %v71 = vadd.f32 %v51, %v70
    %72 = vdwg.mxu0
    %73 = vmatpush.msra.mxu0 %v48
    %74 = vmatpush.msra.mxu0 %v47
    %75 = vmatpush.msra.mxu0 %v46
    %76 = vmatpush.msra.mxu0 %v45
    %77 = vmatpush.msra.mxu0 %v44
    %78 = vmatpush.msra.mxu0 %v43
    %79 = vmatpush.msra.mxu0 %v42
    %80 = vmatpush.msra.mxu0 %v41
    %81 = vmatpush.msra.mxu0 %v40
    %82 = vmatpush.msra.mxu0 %v39
    %83 = vmatpush.msra.mxu0 %v38
    %84 = vmatpush.msra.mxu0 %v37
    %85 = vmatpush.msra.mxu0 %v36
    %86 = vmatpush.msra.mxu0 %v35
    %87 = vmatpush.msra.mxu0 %v34
    %88 = vmatpush.msra.mxu0 %v33
    %89 = vmatmul.f32.gmra.mxu0 %v16
    %v90 = vpop.f32.mrf.mxu0
    %v91 = vadd.f32 %v71, %v90
    %92 = vdwg.mxu0
    %v93 = vmul.f32 %v91, %v91
    %v94 = vlaneseq
    %v95 = vand.u32 %v94, 127
    %vm96 = vcmp.lt.s32.totalorder %v95, 0
    %v97 = vsub.s32 0, %v95
    %v98 = vsel %vm96, %v97, %v95
    %v99 = vshrl.u32 %v98, 4
    %v100 = vand.u32 %v98, 15
    %v101 = vsub.s32 0, %v100
    %v102 = vsel %vm96, %v101, %v100
    %vm103 = vcmp.ne.s32.totalorder %v102, 0
    %vm104 = vcmp.lt.s32.totalorder %v102, 0
    %vm105 = vmand %vm104, %vm103
    %v106 = vadd.s32 %v102, 16
    %v107 = vsel %vm105, %v106, %v102
    %vm108 = vcmp.lt.s32.totalorder %v107, 8
    %v109 = vsel %vm108, 1.0, -1.0
    %vm110 = vcmask 261120
    %v111 = vsel %vm110, %v93, 0.0
    %112 = vadd.xlane.f32.xlu0 %v111
    %v113 = vpop.xlane.xlu0 %112
    %v114 = vmul.f32 %v93, %v109
    %v115 = vsel %vm110, %v114, 0.0
    %116 = vadd.xlane.f32.xlu0 %v115
    %v117 = vpop.xlane.xlu0 %116
    %v118 = vrcp.pop %v113
    %v119 = vmul.f32 %v113, %v118
    %v120 = vsub.f32 1.0, %v119
    %v121 = vmul.f32 %v118, %v120
    %v122 = vadd.f32 %v118, %v121
    %vm123 = vweird.f32 %v113
    %vm124 = vweird.f32 %v118
    %vm125 = vmor %vm123, %vm124
    %v126 = vsel %vm125, %v118, %v122
    %v127 = vand.u32 2147483647, %v113
    %vm128 = vcmp.eq.f32.partialorder %v127, 8.507059e+37
    %v129 = vand.u32 %v113, 2147483648
    %v130 = vor.u32 1.1754944e-38, %v129
    %v131 = vsel %vm128, %v130, %v126
    %v132 = vmul.f32 %v117, %v131
    %vm133 = vcmp.eq.s32.totalorder %v95, 1
    %v134 = vsel %vm133, -1.0, 1.0
    %v135 = vmul.f32 %v132, %v134
    %v136 = vadd.f32 %v135, 1.0
    %v137 = vmul.f32 %v136, 0.5
    %138 = vst [vmem:[#allocation2] sm:$0xff] %v137
    // Predicated region
    $region14: #{tpu_custom_call.1} parent=1 // pred_check
      _
    $region15: #{tpu_custom_call.1} parent=1 // pred_check_branch
      %140 = sbr.rel (0) target = $region17
    $region16: #{tpu_custom_call.1} parent=1 // pred_region
      %142 = vsyncadd [#allocation3], 0
      %s144 = sshll.u32 [#allocation2], 4
      %s145 = int_to_ptr.vmem [resolvable:$true] %s144
      %s146 = sshll.u32 %s3, 4
      %s147 = int_to_ptr.hbm [resolvable:$true] %s146
      %149 = dma.vmem_to_hbm [thread:$0]  %s145, 128, %s147, [#allocation3]
    $region17: #{tpu_custom_call.1} parent=1 // pred_fallthru
      _
    // Predicated region
    $region18: #{tpu_custom_call.1} parent=1 // pred_check
      _
    $region19: #{tpu_custom_call.1} parent=1 // pred_check_branch
      %151 = sbr.rel (0) target = $region21
    $region20: #{tpu_custom_call.1} parent=1 // pred_region
      %153 = dma.done [#allocation3], 128
    $region21: #{tpu_custom_call.1} parent=1 // pred_fallthru
      _
    %154 = vsyncpa [#allocation3], 1

</llo_original>
